<compile_context>
chip_gen: v6e
topology: v6e:2x2x1
jax: 0.10.0
libtpu: 0.0.40
codegen_flags: <defaults>
</compile_context>

<pallas_src>
import functools

import jax
import jax.numpy as jnp
from jax import lax
from jax.experimental import pallas as pl
from jax.experimental.pallas import tpu as pltpu


# -----------------------------------------------------------------------------
# Fused kernel: one im2col matmul for every (filter size, class, filter index),
# masked single-reduce max-pool over time, block-diagonal per-class linear
# head, masked softmax over classes.  One grid step handles B_tile batch rows.
# -----------------------------------------------------------------------------
def _fused_ocn_kernel(x_ref, w_ref, b_ref, hw_ref, hb_ref, o_ref, *,
                      B_tile, L, E, C, nf, filter_sizes, fs_max):
    N_pad = w_ref.shape[1]          # lane-padded 3*C*nf
    C_pad = o_ref.shape[1]          # lane-padded num_classes
    Rt = B_tile * L                 # window rows in this tile
    group = C * nf                  # lanes per filter-size group (pre-pad)

    # Shared im2col window for fs_max; f32 slicing/concat, one bf16 cast.
    x = x_ref[...]                                                  # [Rt, E] f32
    zpad = jnp.zeros((fs_max - 1, E), jnp.float32)
    xp = jnp.concatenate([x, zpad], axis=0)                         # [Rt+fsm-1, E]
    x_win = jnp.concatenate([xp[d:d + Rt, :] for d in range(fs_max)],
                            axis=-1).astype(jnp.bfloat16)           # [Rt, fsm*E]

    # One MXU matmul covers every filter size, stance class and filter index
    # (conv weights are zero-padded along K for fs < fs_max).
    conv = jnp.dot(x_win, w_ref[...],
                   preferred_element_type=jnp.float32)              # [Rt, N_pad]
    conv = jnp.maximum(conv + b_ref[...], 0.0)                      # bias + ReLU

    # Max-pool over time: mask batch-boundary-crossing windows (t > L - fs),
    # then a single cross-sublane reduce.  0-masking is exact post-ReLU.
    conv = conv.reshape(B_tile, L, N_pad)
    t = lax.broadcasted_iota(jnp.int32, (B_tile, L, N_pad), 1)
    lane = lax.broadcasted_iota(jnp.int32, (B_tile, L, N_pad), 2)
    tmax = jnp.full((B_tile, L, N_pad), -1, jnp.int32)              # pad lanes: all masked
    for i, fs in enumerate(filter_sizes):
        in_grp = (lane >= i * group) & (lane < (i + 1) * group)
        tmax = jnp.where(in_grp, L - fs, tmax)
    conv = jnp.where(t <= tmax, conv, 0.0)
    feats = jnp.max(conv, axis=1)                                   # [B_tile, N_pad]

    # Per-class linear head as one block-diagonal lane-padded matmul.
    scores = jnp.dot(feats.astype(jnp.bfloat16), hw_ref[...],
                     preferred_element_type=jnp.float32) + hb_ref[...]  # [B_tile, C_pad]

    # Softmax over the real classes only (pad columns pushed to -inf-ish).
    cls = lax.broadcasted_iota(jnp.int32, (B_tile, C_pad), 1)
    scores = jnp.where(cls < C, scores, -1e30)
    m = jnp.max(scores, axis=-1, keepdims=True)
    e = jnp.exp(scores - m)
    denom = jnp.sum(e, axis=-1, keepdims=True)
    o_ref[...] = (e * pl.reciprocal(denom, approx=True)).astype(o_ref.dtype)


def fused_ocn_forward(x, w_fused, b_fused, head_w, head_b, *,
                      filter_sizes, num_classes, num_filters, b_tile=None):
    """x: [B, L, E] f32.  w_fused: [fs_max*E, N_pad] bf16 (K-zero-padded, N-concat).
    b_fused: [1, N_pad] f32.  head_w: [N_pad, C_pad] bf16 block-diagonal.
    head_b: [1, C_pad] f32.  Returns probs [B, num_classes] f32."""
    B, L, E = x.shape
    fs_max = max(filter_sizes)
    K, N_pad = w_fused.shape
    C_pad = head_w.shape[1]
    if b_tile is None or B % b_tile != 0:
        b_tile = B
    x_flat = x.reshape(B * L, E)

    kernel = functools.partial(
        _fused_ocn_kernel, B_tile=b_tile, L=L, E=E, C=num_classes,
        nf=num_filters, filter_sizes=tuple(filter_sizes), fs_max=fs_max)

    out = pl.pallas_call(
        kernel,
        out_shape=jax.ShapeDtypeStruct((B, C_pad), jnp.float32),
        grid=(B // b_tile,),
        in_specs=[
            pl.BlockSpec((b_tile * L, E), lambda i: (i, 0)),   # x tile
            pl.BlockSpec((K, N_pad), lambda i: (0, 0)),        # fused conv W
            pl.BlockSpec((1, N_pad), lambda i: (0, 0)),        # fused conv b
            pl.BlockSpec((N_pad, C_pad), lambda i: (0, 0)),    # head W
            pl.BlockSpec((1, C_pad), lambda i: (0, 0)),        # head b
        ],
        out_specs=pl.BlockSpec((b_tile, C_pad), lambda i: (i, 0)),
        compiler_params=pltpu.CompilerParams(
            dimension_semantics=("parallel",),
            vmem_limit_bytes=64 * 1024 * 1024),
    )(x_flat, w_fused, b_fused, head_w, head_b)
    return out[:, :num_classes]


# -----------------------------------------------------------------------------
# Full model wrapper (glue in plain JAX, hot path in the fused Pallas kernel).
# -----------------------------------------------------------------------------
class KnowledgeExtractorPallas:
    def __init__(self, vocab_size=50, hidden_size=32, num_classes=3,
                 num_filters=16, filter_sizes=(2, 3, 4), seed=0):
        self.hidden_size = hidden_size
        self.num_classes = num_classes
        self.num_filters = num_filters
        self.filter_sizes = tuple(filter_sizes)
        C, nf, E = num_classes, num_filters, hidden_size
        n = len(self.filter_sizes)
        fs_max = max(self.filter_sizes)

        key = jax.random.PRNGKey(seed)
        keys = jax.random.split(key, 3 + 2 * n)

        # "TS-O encoder": deterministic token embedding table (stands in for BERT).
        # TODO(synk): BERT attention stack omitted; dropout is identity (eval).
        self.emb_table = jax.random.normal(
            keys[0], (vocab_size, E), jnp.float32) * 0.02

        # PyTorch-layout conv params (used by the pure-JAX reference):
        #   conv_w_torch[fs]: [C, nf, fs, E], conv_b_torch[fs]: [C, nf]
        self.conv_w_torch = {}
        self.conv_b_torch = {}
        for i, fs in enumerate(self.filter_sizes):
            self.conv_w_torch[fs] = jax.random.normal(
                keys[1 + 2 * i], (C, nf, fs, E), jnp.float32) * 0.1
            self.conv_b_torch[fs] = jax.random.normal(
                keys[2 + 2 * i], (C, nf), jnp.float32) * 0.1

        feat_dim = n * nf
        self.lin_w = jax.random.normal(keys[-2], (C, feat_dim), jnp.float32) * 0.1
        self.lin_b = jax.random.normal(keys[-1], (C, 1), jnp.float32) * 0.1

        # ---- Kernel-side layouts (host-side, one-time) ----------------------
        # All filter sizes fused into ONE matmul:
        #   K = fs_max*E (weights of smaller fs zero-padded along K),
        #   N = n*C*nf concatenated, then lane-padded to a multiple of 128.
        # W_fused[d*E + e, i*C*nf + c*nf + j] = W_torch[fs_i][c, j, d, e].
        group = C * nf
        n_act = n * group
        self.n_pad = max(128, ((n_act + 127) // 128) * 128)
        K = fs_max * E
        w_fused = jnp.zeros((K, self.n_pad), jnp.float32)
        b_fused = jnp.zeros((1, self.n_pad), jnp.float32)
        for i, fs in enumerate(self.filter_sizes):
            w = self.conv_w_torch[fs]                               # [C, nf, fs, E]
            w = jnp.transpose(w, (2, 3, 0, 1)).reshape(fs * E, group)
            w_fused = w_fused.at[:fs * E, i * group:(i + 1) * group].set(w)
            b_fused = b_fused.at[0, i * group:(i + 1) * group].set(
                self.conv_b_torch[fs].reshape(-1))
        self.w_fused = w_fused.astype(jnp.bfloat16)
        self.b_fused = b_fused

        # Per-class linear head as a block-diagonal lane-padded matrix so the
        # kernel emits [B, C_pad] with one dense dot.  Feature order matches
        # the kernel: (filter-size major, class, filter-index).
        self.c_pad = 128
        eye_c = jnp.eye(C, dtype=jnp.float32)
        head_w = jnp.zeros((self.n_pad, self.c_pad), jnp.float32)
        for i in range(n):
            w_i = self.lin_w[:, i * nf:(i + 1) * nf]                # [C, nf]
            blk = jnp.einsum('cf,cd->cfd', w_i, eye_c).reshape(group, C)
            head_w = head_w.at[i * group:(i + 1) * group, :C].set(blk)
        self.head_w = head_w.astype(jnp.bfloat16)
        self.head_b = jnp.zeros((1, self.c_pad), jnp.float32).at[0, :C].set(
            self.lin_b[:, 0])

    def __call__(self, input_ids, token_type_ids=None):
        # Encoder: embedding lookup (glue).
        x = jnp.take(self.emb_table, input_ids, axis=0)             # [B, L, E]
        return fused_ocn_forward(
            x, self.w_fused, self.b_fused, self.head_w, self.head_b,
            filter_sizes=self.filter_sizes, num_classes=self.num_classes,
            num_filters=self.num_filters)                           # [B, C]

    def reference(self, input_ids, token_type_ids=None):
        """Pure-JAX f32 reference matching the PyTorch OCN math."""
        x = jnp.take(self.emb_table, input_ids, axis=0)             # [B, L, E]
        B, L, _ = x.shape
        scores = []
        for c in range(self.num_classes):
            per_fs = []
            for fs in self.filter_sizes:
                L_out = L - fs + 1
                w = self.conv_w_torch[fs][c]                        # [nf, fs, E]
                b = self.conv_b_torch[fs][c]                        # [nf]
                wins = jnp.stack([x[:, t:t + fs, :] for t in range(L_out)],
                                 axis=1)                            # [B, L_out, fs, E]
                conv = jnp.einsum('btde,jde->btj', wins, w) + b     # [B, L_out, nf]
                conv = jnp.maximum(conv, 0.0)
                per_fs.append(jnp.max(conv, axis=1))                # [B, nf]
            feat = jnp.concatenate(per_fs, axis=-1)                 # [B, n*nf]
            scores.append(feat @ self.lin_w[c] + self.lin_b[c, 0])  # [B]
        scores = jnp.stack(scores, axis=-1)                         # [B, C]
        return jax.nn.softmax(scores, axis=-1)


if __name__ == "__main__":
    B, L = 2, 8
    VOCAB, HIDDEN = 50, 32

    key = jax.random.PRNGKey(0)
    k_ids, _ = jax.random.split(key)
    input_ids = jax.random.randint(k_ids, (B, L), 0, VOCAB, dtype=jnp.int32)
    token_type_ids = jnp.zeros((B, L), dtype=jnp.int32)

    model = KnowledgeExtractorPallas(vocab_size=VOCAB, hidden_size=HIDDEN,
                                     num_classes=3, num_filters=16,
                                     filter_sizes=(2, 3, 4), seed=0)

    probs = model(input_ids, token_type_ids)
    probs = jax.block_until_ready(probs)

    ref = model.reference(input_ids, token_type_ids)

    assert probs.shape == (B, 3)
    assert bool(jnp.all(jnp.isfinite(probs)))
    # Tolerances cover bf16 MXU inputs + EUP approx-reciprocal in the softmax.
    assert bool(jnp.allclose(jnp.sum(probs, axis=1), 1.0, atol=1e-2))
    assert bool(jnp.allclose(probs, ref, atol=2e-2))
    print("KERNEL_OK")
</pallas_src>

<mosaic_0001>
module attributes {stable_mosaic.version = 11 : i64} {
  func.func @_fused_ocn_kernel(%arg0: i32, %arg1: memref<16x32xf32, #tpu.memory_space<vmem>>, %arg2: memref<128x256xbf16, #tpu.memory_space<vmem>>, %arg3: memref<1x256xf32, #tpu.memory_space<vmem>>, %arg4: memref<256x128xbf16, #tpu.memory_space<vmem>>, %arg5: memref<1x128xf32, #tpu.memory_space<vmem>>, %arg6: memref<2x128xf32, #tpu.memory_space<vmem>>) attributes {dimension_semantics = [#tpu.dimension_semantics<parallel>], iteration_bounds = array<i64: 1>, scalar_prefetch = 0 : i64, scratch_operands = 0 : i64, tpu.core_type = #tpu.core_type<tc>, window_params = [{transform_indices = @transform_0, window_bounds = array<i64: 16, 32>}, {pipeline_mode = #tpu.pipeline_mode<synchronous>, transform_indices = @transform_1, window_bounds = array<i64: 128, 256>}, {pipeline_mode = #tpu.pipeline_mode<synchronous>, transform_indices = @transform_2, window_bounds = array<i64: 1, 256>}, {pipeline_mode = #tpu.pipeline_mode<synchronous>, transform_indices = @transform_3, window_bounds = array<i64: 256, 128>}, {pipeline_mode = #tpu.pipeline_mode<synchronous>, transform_indices = @transform_4, window_bounds = array<i64: 1, 128>}, {transform_indices = @transform_5, window_bounds = array<i64: 2, 128>}]} {
    %c0 = arith.constant 0 : index
    %c0_0 = arith.constant 0 : index
    %0 = vector.load %arg1[%c0, %c0_0] : memref<16x32xf32, #tpu.memory_space<vmem>>, vector<16x32xf32>
    %cst = arith.constant 0.000000e+00 : f32
    %1 = vector.broadcast %cst : f32 to vector<3x32xf32>
    %2 = tpu.concatenate %0, %1 in 0 : vector<16x32xf32>, vector<3x32xf32> -> vector<19x32xf32>
    %3 = vector.extract_strided_slice %2 {offsets = [0, 0], sizes = [16, 32], strides = [1, 1]} : vector<19x32xf32> to vector<16x32xf32>
    %4 = vector.extract_strided_slice %2 {offsets = [1, 0], sizes = [16, 32], strides = [1, 1]} : vector<19x32xf32> to vector<16x32xf32>
    %5 = vector.extract_strided_slice %2 {offsets = [2, 0], sizes = [16, 32], strides = [1, 1]} : vector<19x32xf32> to vector<16x32xf32>
    %6 = vector.extract_strided_slice %2 {offsets = [3, 0], sizes = [16, 32], strides = [1, 1]} : vector<19x32xf32> to vector<16x32xf32>
    %7 = tpu.concatenate %3, %4, %5, %6 in 1 : vector<16x32xf32>, vector<16x32xf32>, vector<16x32xf32>, vector<16x32xf32> -> vector<16x128xf32>
    %8 = arith.truncf %7 : vector<16x128xf32> to vector<16x128xbf16>
    %c0_1 = arith.constant 0 : index
    %c0_2 = arith.constant 0 : index
    %9 = vector.load %arg2[%c0_1, %c0_2] : memref<128x256xbf16, #tpu.memory_space<vmem>>, vector<128x256xbf16>
    %cst_3 = arith.constant dense<0.000000e+00> : vector<16x256xf32>
    %10 = tpu.matmul %8, %9, %cst_3 {dimension_numbers = #tpu.dot_dimension_numbers<[1], [0], [0], [1], [0, 0, 1, 1], [], []>} : vector<16x128xbf16>, vector<128x256xbf16>, vector<16x256xf32> -> vector<16x256xf32>
    %c0_4 = arith.constant 0 : index
    %c0_5 = arith.constant 0 : index
    %11 = vector.load %arg3[%c0_4, %c0_5] : memref<1x256xf32, #tpu.memory_space<vmem>>, vector<1x256xf32>
    %12 = vector.broadcast %11 : vector<1x256xf32> to vector<16x256xf32>
    %13 = arith.addf %10, %12 : vector<16x256xf32>
    %cst_6 = arith.constant 0.000000e+00 : f32
    %14 = vector.broadcast %cst_6 : f32 to vector<16x256xf32>
    %15 = arith.maximumf %13, %14 : vector<16x256xf32>
    %16 = vector.shape_cast %15 : vector<16x256xf32> to vector<2x8x256xf32>
    %17 = tpu.iota {dimensions = array<i32: 1>} : vector<2x8x256xi32>
    %18 = tpu.iota {dimensions = array<i32: 2>} : vector<2x8x256xi32>
    %c-1_i32 = arith.constant -1 : i32
    %19 = vector.broadcast %c-1_i32 : i32 to vector<2x8x256xi32>
    %c0_i32 = arith.constant 0 : i32
    %20 = vector.broadcast %c0_i32 : i32 to vector<2x8x256xi32>
    %21 = arith.cmpi sge, %18, %20 : vector<2x8x256xi32>
    %c48_i32 = arith.constant 48 : i32
    %22 = vector.broadcast %c48_i32 : i32 to vector<2x8x256xi32>
    %23 = arith.cmpi slt, %18, %22 : vector<2x8x256xi32>
    %24 = arith.andi %21, %23 : vector<2x8x256xi1>
    %c6_i32 = arith.constant 6 : i32
    %25 = vector.broadcast %c6_i32 : i32 to vector<2x8x256xi32>
    %26 = arith.select %24, %25, %19 : vector<2x8x256xi1>, vector<2x8x256xi32>
    %c48_i32_7 = arith.constant 48 : i32
    %27 = vector.broadcast %c48_i32_7 : i32 to vector<2x8x256xi32>
    %28 = arith.cmpi sge, %18, %27 : vector<2x8x256xi32>
    %c96_i32 = arith.constant 96 : i32
    %29 = vector.broadcast %c96_i32 : i32 to vector<2x8x256xi32>
    %30 = arith.cmpi slt, %18, %29 : vector<2x8x256xi32>
    %31 = arith.andi %28, %30 : vector<2x8x256xi1>
    %c5_i32 = arith.constant 5 : i32
    %32 = vector.broadcast %c5_i32 : i32 to vector<2x8x256xi32>
    %33 = arith.select %31, %32, %26 : vector<2x8x256xi1>, vector<2x8x256xi32>
    %c96_i32_8 = arith.constant 96 : i32
    %34 = vector.broadcast %c96_i32_8 : i32 to vector<2x8x256xi32>
    %35 = arith.cmpi sge, %18, %34 : vector<2x8x256xi32>
    %c144_i32 = arith.constant 144 : i32
    %36 = vector.broadcast %c144_i32 : i32 to vector<2x8x256xi32>
    %37 = arith.cmpi slt, %18, %36 : vector<2x8x256xi32>
    %38 = arith.andi %35, %37 : vector<2x8x256xi1>
    %c4_i32 = arith.constant 4 : i32
    %39 = vector.broadcast %c4_i32 : i32 to vector<2x8x256xi32>
    %40 = arith.select %38, %39, %33 : vector<2x8x256xi1>, vector<2x8x256xi32>
    %41 = arith.cmpi sle, %17, %40 : vector<2x8x256xi32>
    %cst_9 = arith.constant 0.000000e+00 : f32
    %42 = vector.broadcast %cst_9 : f32 to vector<2x8x256xf32>
    %43 = arith.select %41, %16, %42 : vector<2x8x256xi1>, vector<2x8x256xf32>
    %cst_10 = arith.constant dense<0xFF800000> : vector<2x256xf32>
    %44 = vector.multi_reduction <maximumf>, %43, %cst_10 [1] : vector<2x8x256xf32> to vector<2x256xf32>
    %45 = arith.truncf %44 : vector<2x256xf32> to vector<2x256xbf16>
    %c0_11 = arith.constant 0 : index
    %c0_12 = arith.constant 0 : index
    %46 = vector.load %arg4[%c0_11, %c0_12] : memref<256x128xbf16, #tpu.memory_space<vmem>>, vector<256x128xbf16>
    %cst_13 = arith.constant dense<0.000000e+00> : vector<2x128xf32>
    %47 = tpu.matmul %45, %46, %cst_13 {dimension_numbers = #tpu.dot_dimension_numbers<[1], [0], [0], [1], [0, 0, 1, 1], [], []>} : vector<2x256xbf16>, vector<256x128xbf16>, vector<2x128xf32> -> vector<2x128xf32>
    %c0_14 = arith.constant 0 : index
    %c0_15 = arith.constant 0 : index
    %48 = vector.load %arg5[%c0_14, %c0_15] : memref<1x128xf32, #tpu.memory_space<vmem>>, vector<1x128xf32>
    %49 = vector.broadcast %48 : vector<1x128xf32> to vector<2x128xf32>
    %50 = arith.addf %47, %49 : vector<2x128xf32>
    %51 = tpu.iota {dimensions = array<i32: 1>} : vector<2x128xi32>
    %c3_i32 = arith.constant 3 : i32
    %52 = vector.broadcast %c3_i32 : i32 to vector<2x128xi32>
    %53 = arith.cmpi slt, %51, %52 : vector<2x128xi32>
    %cst_16 = arith.constant -1.000000e+30 : f32
    %54 = vector.broadcast %cst_16 : f32 to vector<2x128xf32>
    %55 = arith.select %53, %50, %54 : vector<2x128xi1>, vector<2x128xf32>
    %cst_17 = arith.constant dense<0xFF800000> : vector<2xf32>
    %56 = vector.multi_reduction <maximumf>, %55, %cst_17 [1] : vector<2x128xf32> to vector<2xf32>
    %57 = vector.shape_cast %56 : vector<2xf32> to vector<2x1xf32>
    %58 = vector.broadcast %57 : vector<2x1xf32> to vector<2x128xf32>
    %59 = arith.subf %55, %58 : vector<2x128xf32>
    %60 = math.exp %59 : vector<2x128xf32>
    %cst_18 = arith.constant dense<0.000000e+00> : vector<2xf32>
    %61 = vector.multi_reduction <add>, %60, %cst_18 [1] : vector<2x128xf32> to vector<2xf32>
    %62 = vector.shape_cast %61 : vector<2xf32> to vector<2x1xf32>
    %63 = tpu.reciprocal %62 {approx = true} : vector<2x1xf32> -> vector<2x1xf32>
    %64 = vector.broadcast %63 : vector<2x1xf32> to vector<2x128xf32>
    %65 = arith.mulf %60, %64 : vector<2x128xf32>
    %c0_19 = arith.constant 0 : index
    %c0_20 = arith.constant 0 : index
    %66 = vector.load %arg6[%c0_19, %c0_20] : memref<2x128xf32, #tpu.memory_space<vmem>>, vector<2x128xf32>
    tpu.vector_store %arg6[%c0_19, %c0_20], %65 {strides = array<i32>} : memref<2x128xf32, #tpu.memory_space<vmem>>, vector<2x128xf32>,
    return
  }
  func.func @transform_0(%arg0: i32) -> (i32, i32) {
    %c0_i32 = arith.constant 0 : i32
    %c0_i32_0 = arith.constant 0 : i32
    return %arg0, %c0_i32 : i32, i32
  }
  func.func @transform_1(%arg0: i32) -> (i32, i32) {
    %c0_i32 = arith.constant 0 : i32
    %c0_i32_0 = arith.constant 0 : i32
    %c0_i32_1 = arith.constant 0 : i32
    return %c0_i32, %c0_i32_0 : i32, i32
  }
  func.func @transform_2(%arg0: i32) -> (i32, i32) {
    %c0_i32 = arith.constant 0 : i32
    %c0_i32_0 = arith.constant 0 : i32
    %c0_i32_1 = arith.constant 0 : i32
    return %c0_i32, %c0_i32_0 : i32, i32
  }
  func.func @transform_3(%arg0: i32) -> (i32, i32) {
    %c0_i32 = arith.constant 0 : i32
    %c0_i32_0 = arith.constant 0 : i32
    %c0_i32_1 = arith.constant 0 : i32
    return %c0_i32, %c0_i32_0 : i32, i32
  }
  func.func @transform_4(%arg0: i32) -> (i32, i32) {
    %c0_i32 = arith.constant 0 : i32
    %c0_i32_0 = arith.constant 0 : i32
    %c0_i32_1 = arith.constant 0 : i32
    return %c0_i32, %c0_i32_0 : i32, i32
  }
  func.func @transform_5(%arg0: i32) -> (i32, i32) {
    %c0_i32 = arith.constant 0 : i32
    %c0_i32_0 = arith.constant 0 : i32
    return %arg0, %c0_i32 : i32, i32
  }
}

</mosaic_0001>

<llo_original>
// kernel: tpu_custom_call.1
$region0: #{tpu_custom_call.1}
  #allocation0 [shape = 'u32[]', space=smem, size = 0x4, offset = 0x4, fixed_abs, tag = 'smem constant byte address 0x4 - core index']
  #allocation1 [shape = 'u32[144,128]{1,0:T(1,128)}', space=vmem, size = 0x12000, scoped, tag = 'internal scratch']
  %s0 = inlined_call_operand.hbm [shape: f32[16,32], index: 0, kind: input, shape index: {}]
  %s1 = inlined_call_operand.hbm [shape: bf16[128,256], index: 1, kind: input, shape index: {}]
  %s2 = inlined_call_operand.vmem [shape: f32[1,256], index: 2, kind: input, shape index: {}]
  %s3 = inlined_call_operand.hbm [shape: bf16[256,128], index: 3, kind: input, shape index: {}]
  %s4 = inlined_call_operand.vmem [shape: f32[1,128], index: 4, kind: input, shape index: {}]
  %s5 = inlined_call_operand.hbm [shape: f32[2,128], index: 5, kind: output, shape index: {}]
  %s6 = sld [smem:[#allocation0]]
  $region42: #{tpu_custom_call.1} parent=0
    _
  %s8 = ssub.s32 1, %s6
  %s9 = scalar_select 0, %s8, %s6
  $region1: #{tpu_custom_call.1} parent=0
    #allocation2 [shape = 'u8[8192]{0}', space=vmem, size = 0x2000, scoped, tag = 'input window, operand 0, single buffered']
    #allocation3 [shape = 's32[1]{0}', space=sflag, size = 0x4, scoped, tag = 'scoped memory for tpu_custom_call.1']
    #allocation4 [shape = 's32[1]{0}', space=sflag, size = 0x4, scoped, tag = 'scoped memory for tpu_custom_call.1']
    #allocation5 [shape = 'u8[65536]{0}', space=vmem, size = 0x10000, scoped, tag = 'input window, operand 1, single buffered']
    #allocation6 [shape = 's32[1]{0}', space=sflag, size = 0x4, scoped, tag = 'scoped memory for tpu_custom_call.1']
    #allocation7 [shape = 'u8[65536]{0}', space=vmem, size = 0x10000, scoped, tag = 'input window, operand 3, single buffered']
    #allocation8 [shape = 'u8[1024]{0}', space=vmem, size = 0x400, scoped, tag = 'output window, operand 0, single buffered']
    %10 = vsyncpa [#allocation3], 0
    %11 = vsyncpa [#allocation6], 0
    %12 = vsyncpa [#allocation4], 0
    // Predicated region
    $region2: #{tpu_custom_call.1} parent=1 // pred_check
      _
    $region3: #{tpu_custom_call.1} parent=1 // pred_check_branch
      %14 = sbr.rel (0) target = $region5
    $region4: #{tpu_custom_call.1} parent=1 // pred_region
      %s16 = ssub.s32 256, 256
      %17 = vsyncadd [#allocation3], %s16
      %s18 = sshll.u32 [#allocation2], 4
      %s19 = int_to_ptr.vmem [resolvable:$true] %s18
      %24 = dma.hbm_to_vmem [thread:$0]  %s0, 256, %s19, [#allocation3], 128, 128, 8
    $region5: #{tpu_custom_call.1} parent=1 // pred_fallthru
      _
    // Predicated region
    $region6: #{tpu_custom_call.1} parent=1 // pred_check
      _
    $region7: #{tpu_custom_call.1} parent=1 // pred_check_branch
      %26 = sbr.rel (0) target = $region9
    $region8: #{tpu_custom_call.1} parent=1 // pred_region
      %s28 = ssub.s32 2048, 2048
      %29 = vsyncadd [#allocation6], %s28
      %s30 = sshll.u32 [#allocation5], 4
      %s31 = int_to_ptr.vmem [resolvable:$true] %s30
      %36 = dma.hbm_to_vmem [thread:$0]  %s1, 2048, %s31, [#allocation6], 128, 128, 8
    $region9: #{tpu_custom_call.1} parent=1 // pred_fallthru
      _
    // Predicated region
    $region10: #{tpu_custom_call.1} parent=1 // pred_check
      _
    $region11: #{tpu_custom_call.1} parent=1 // pred_check_branch
      %38 = sbr.rel (0) target = $region13
    $region12: #{tpu_custom_call.1} parent=1 // pred_region
      _
    $region13: #{tpu_custom_call.1} parent=1 // pred_fallthru
      _
    // Predicated region
    $region14: #{tpu_custom_call.1} parent=1 // pred_check
      _
    $region15: #{tpu_custom_call.1} parent=1 // pred_check_branch
      %40 = sbr.rel (0) target = $region17
    $region16: #{tpu_custom_call.1} parent=1 // pred_region
      %s42 = ssub.s32 2048, 2048
      %43 = vsyncadd [#allocation6], %s42
      %s44 = sshll.u32 [#allocation7], 4
      %s45 = int_to_ptr.vmem [resolvable:$true] %s44
      %50 = dma.hbm_to_vmem [thread:$0]  %s3, 2048, %s45, [#allocation6], 64, 64, 4
    $region17: #{tpu_custom_call.1} parent=1 // pred_fallthru
      _
    // Predicated region
    $region18: #{tpu_custom_call.1} parent=1 // pred_check
      _
    $region19: #{tpu_custom_call.1} parent=1 // pred_check_branch
      %52 = sbr.rel (0) target = $region21
    $region20: #{tpu_custom_call.1} parent=1 // pred_region
      _
    $region21: #{tpu_custom_call.1} parent=1 // pred_fallthru
      _
    // Predicated region
    $region22: #{tpu_custom_call.1} parent=1 // pred_check
      _
    $region23: #{tpu_custom_call.1} parent=1 // pred_check_branch
      %54 = sbr.rel (0) target = $region25
    $region24: #{tpu_custom_call.1} parent=1 // pred_region
      %55 = dma.done [#allocation3], 256
    $region25: #{tpu_custom_call.1} parent=1 // pred_fallthru
      _
    // Predicated region
    $region26: #{tpu_custom_call.1} parent=1 // pred_check
      _
    $region27: #{tpu_custom_call.1} parent=1 // pred_check_branch
      %57 = sbr.rel (0) target = $region29
    $region28: #{tpu_custom_call.1} parent=1 // pred_region
      %58 = dma.done [#allocation6], 2048
    $region29: #{tpu_custom_call.1} parent=1 // pred_fallthru
      _
    // Predicated region
    $region30: #{tpu_custom_call.1} parent=1 // pred_check
      _
    $region31: #{tpu_custom_call.1} parent=1 // pred_check_branch
      %60 = sbr.rel (0) target = $region33
    $region32: #{tpu_custom_call.1} parent=1 // pred_region
      %61 = dma.done [#allocation6], 2048
    $region33: #{tpu_custom_call.1} parent=1 // pred_fallthru
      _
    %v63 = vld [vmem:[#allocation2] sm:$0xff]
    %v64 = vld [vmem:[#allocation2 + $0x8] sm:$0xff]
    %vm68 = vcmask 1046528
    %v69 = vrot.slane %v63, 1
    %v70 = vrot.slane %v64, 1
    %v71 = vsel %vm68, %v69, %v70
    %v72 = vrot.slane 0.0, 1
    %v73 = vsel %vm68, %v70, %v72
    %74 = vrot.lane.b32.xlu0 %v71, 32
    %v75 = vpop.permute.xlu0 %74
    %76 = vrot.lane.b32.xlu0 %v73, 32
    %v77 = vpop.permute.xlu0 %76
    %vm80 = vcmask 1045504
    %v81 = vrot.slane %v63, 2
    %v82 = vrot.slane %v64, 2
    %v83 = vsel %vm80, %v81, %v82
    %v84 = vrot.slane 0.0, 2
    %v85 = vsel %vm80, %v82, %v84
    %86 = vrot.lane.b32.xlu0 %v83, 64
    %v87 = vpop.permute.xlu0 %86
    %88 = vrot.lane.b32.xlu0 %v85, 64
    %v89 = vpop.permute.xlu0 %88
    %vm92 = vcmask 1044480
    %v93 = vrot.slane %v63, 3
    %v94 = vrot.slane %v64, 3
    %v95 = vsel %vm92, %v93, %v94
    %v96 = vrot.slane 0.0, 3
    %v97 = vsel %vm92, %v94, %v96
    %98 = vrot.lane.b32.xlu0 %v95, 96
    %v99 = vpop.permute.xlu0 %98
    %100 = vrot.lane.b32.xlu0 %v97, 96
    %v101 = vpop.permute.xlu0 %100
    %vm104 = vcmask 261120
    %v105 = vsel %vm104, %v63, %v75
    %v106 = vsel %vm104, %v64, %v77
    %vm107 = vcmask 523264
    %v108 = vsel %vm107, %v105, %v87
    %v109 = vsel %vm107, %v106, %v89
    %vm110 = vcmask 785408
    %v111 = vsel %vm110, %v108, %v99
    %v112 = vsel %vm110, %v109, %v101
    %v113 = vpack.c.bf16 %v112, %v111
    %v114 = vld [vmem:[#allocation5] sm:$0xff]
    %v115 = vld [vmem:[#allocation5 + $0x8] sm:$0xff]
    %v116 = vld [vmem:[#allocation5 + $0x10] sm:$0xff]
    %v117 = vld [vmem:[#allocation5 + $0x18] sm:$0xff]
    %v118 = vld [vmem:[#allocation5 + $0x20] sm:$0xff]
    %v119 = vld [vmem:[#allocation5 + $0x28] sm:$0xff]
    %v120 = vld [vmem:[#allocation5 + $0x30] sm:$0xff]
    %v121 = vld [vmem:[#allocation5 + $0x38] sm:$0xff]
    %v122 = vld [vmem:[#allocation5 + $0x40] sm:$0xff]
    %v123 = vld [vmem:[#allocation5 + $0x48] sm:$0xff]
    %v124 = vld [vmem:[#allocation5 + $0x50] sm:$0xff]
    %v125 = vld [vmem:[#allocation5 + $0x58] sm:$0xff]
    %v126 = vld [vmem:[#allocation5 + $0x60] sm:$0xff]
    %v127 = vld [vmem:[#allocation5 + $0x68] sm:$0xff]
    %v128 = vld [vmem:[#allocation5 + $0x70] sm:$0xff]
    %v129 = vld [vmem:[#allocation5 + $0x78] sm:$0xff]
    %v130 = vld [vmem:[%s2] sm:$0x3]
    %v132 = vlaneseq
    %v133 = vshrl.u32 %v132, 7
    %v134 = vsub.s32 0, %v133
    %v135 = vrot.slane %v130, %v134
    %v136 = vlaneseq
    %v137 = vshrl.u32 %v136, 7
    %v138 = vsub.s32 1, %v137
    %v139 = vrot.slane %v130, %v138
    %v158 = vunpack.c.l.b16 %v114
    %v159 = vunpack.c.h.b16 %v114
    %v160 = vunpack.c.l.b16 %v115
    %v161 = vunpack.c.h.b16 %v115
    %v162 = vunpack.c.l.b16 %v116
    %v163 = vunpack.c.h.b16 %v116
    %v164 = vunpack.c.l.b16 %v117
    %v165 = vunpack.c.h.b16 %v117
    %v166 = vunpack.c.l.b16 %v118
    %v167 = vunpack.c.h.b16 %v118
    %v168 = vunpack.c.l.b16 %v119
    %v169 = vunpack.c.h.b16 %v119
    %v170 = vunpack.c.l.b16 %v120
    %v171 = vunpack.c.h.b16 %v120
    %v172 = vunpack.c.l.b16 %v121
    %v173 = vunpack.c.h.b16 %v121
    %v174 = vunpack.c.l.b16 %v122
    %v175 = vunpack.c.h.b16 %v122
    %v176 = vunpack.c.l.b16 %v123
    %v177 = vunpack.c.h.b16 %v123
    %v178 = vunpack.c.l.b16 %v124
    %v179 = vunpack.c.h.b16 %v124
    %v180 = vunpack.c.l.b16 %v125
    %v181 = vunpack.c.h.b16 %v125
    %v182 = vunpack.c.l.b16 %v126
    %v183 = vunpack.c.h.b16 %v126
    %v184 = vunpack.c.l.b16 %v127
    %v185 = vunpack.c.h.b16 %v127
    %v186 = vunpack.c.l.b16 %v128
    %v187 = vunpack.c.h.b16 %v128
    %v188 = vunpack.c.l.b16 %v129
    %v189 = vunpack.c.h.b16 %v129
    %v190 = vpack.c.b16 %v160, %v158
    %v191 = vpack.c.b16 %v161, %v159
    %v192 = vpack.c.b16 %v164, %v162
    %v193 = vpack.c.b16 %v165, %v163
    %v194 = vpack.c.b16 %v168, %v166
    %v195 = vpack.c.b16 %v169, %v167
    %v196 = vpack.c.b16 %v172, %v170
    %v197 = vpack.c.b16 %v173, %v171
    %v198 = vpack.c.b16 %v176, %v174
    %v199 = vpack.c.b16 %v177, %v175
    %v200 = vpack.c.b16 %v180, %v178
    %v201 = vpack.c.b16 %v181, %v179
    %v202 = vpack.c.b16 %v184, %v182
    %v203 = vpack.c.b16 %v185, %v183
    %v204 = vpack.c.b16 %v188, %v186
    %v205 = vpack.c.b16 %v189, %v187
    %222 = vmatprep.subr.bf16.mxu0 %v205
    %223 = vmatpush1.bf16.msra.mxu0 %v204
    %224 = vmatprep.subr.bf16.mxu0 %v203
    %225 = vmatpush1.bf16.msra.mxu0 %v202
    %226 = vmatprep.subr.bf16.mxu0 %v201
    %227 = vmatpush1.bf16.msra.mxu0 %v200
    %228 = vmatprep.subr.bf16.mxu0 %v199
    %229 = vmatpush1.bf16.msra.mxu0 %v198
    %230 = vmatprep.subr.bf16.mxu0 %v197
    %231 = vmatpush1.bf16.msra.mxu0 %v196
    %232 = vmatprep.subr.bf16.mxu0 %v195
    %233 = vmatpush1.bf16.msra.mxu0 %v194
    %234 = vmatprep.subr.bf16.mxu0 %v193
    %235 = vmatpush1.bf16.msra.mxu0 %v192
    %236 = vmatprep.subr.bf16.mxu0 %v191
    %237 = vmatpush1.bf16.msra.mxu0 %v190
    %238 = vmatprep.subr.bf16.mxu0 0
    %239 = vmatpush2.bf16.msra.mxu0 0
    %240 = vmatprep.subr.bf16.mxu0 0
    %241 = vmatpush2.bf16.msra.mxu0 0
    %242 = vmatprep.subr.bf16.mxu0 0
    %243 = vmatpush2.bf16.msra.mxu0 0
    %244 = vmatprep.subr.bf16.mxu0 0
    %245 = vmatpush2.bf16.msra.mxu0 0
    %246 = vmatprep.subr.bf16.mxu0 0
    %247 = vmatpush2.bf16.msra.mxu0 0
    %248 = vmatprep.subr.bf16.mxu0 0
    %249 = vmatpush2.bf16.msra.mxu0 0
    %250 = vmatprep.subr.bf16.mxu0 0
    %251 = vmatpush2.bf16.msra.mxu0 0
    %252 = vmatprep.subr.bf16.mxu0 0
    %253 = vmatpush2.bf16.msra.mxu0 0
    %254 = vmatprep.mubr.bf16.mxu0 0
    %255 = vmatmul.mubr.bf16.gmra.mxu0 %v113
    %v256 = vpop.f32.mrf.mxu0
    %v257 = vadd.f32 %v135, %v256
    %v258 = vpop.f32.mrf.mxu0
    %v259 = vadd.f32 %v139, %v258
    %v260 = vpop.f32.mrf.mxu0
    %v261 = vadd.f32 %v135, %v260
    %v262 = vpop.f32.mrf.mxu0
    %v263 = vadd.f32 %v139, %v262
    %264 = vdwg.mxu0
    %v265 = vmax.f32 %v257, 0.0
    %v266 = vmax.f32 %v259, 0.0
    %v267 = vmax.f32 %v261, 0.0
    %v268 = vmax.f32 %v263, 0.0
    %v269 = vlaneseq
    %v270 = vshrl.u32 %v269, 7
    %v271 = vlaneseq
    %v272 = vand.u32 %v271, 127
    %v273 = vadd.s32 %v272, 128
    %vm274 = vcmp.ge.s32.totalorder %v272, 0
    %vm275 = vcmp.ge.s32.totalorder %v273, 0
    %vm276 = vcmp.lt.s32.totalorder %v272, 48
    %vm277 = vcmp.lt.s32.totalorder %v273, 48
    %vm278 = vmand %vm274, %vm276
    %vm279 = vmand %vm275, %vm277
    %v280 = vsel %vm278, 6, 4294967295
    %v281 = vsel %vm279, 6, 4294967295
    %vm282 = vcmp.ge.s32.totalorder %v272, 48
    %vm283 = vcmp.ge.s32.totalorder %v273, 48
    %vm284 = vcmp.lt.s32.totalorder %v272, 96
    %vm285 = vcmp.lt.s32.totalorder %v273, 96
    %vm286 = vmand %vm282, %vm284
    %vm287 = vmand %vm283, %vm285
    %v288 = vsel %vm286, 5, %v280
    %v289 = vsel %vm287, 5, %v281
    %vm290 = vcmp.ge.s32.totalorder %v272, 96
    %vm291 = vcmp.ge.s32.totalorder %v273, 96
    %vm292 = vcmp.lt.s32.totalorder %v272, 144
    %vm293 = vcmp.lt.s32.totalorder %v273, 144
    %vm294 = vmand %vm290, %vm292
    %vm295 = vmand %vm291, %vm293
    %v296 = vsel %vm294, 4, %v288
    %v297 = vsel %vm295, 4, %v289
    %vm298 = vcmp.le.s32.totalorder %v270, %v296
    %vm299 = vcmp.le.s32.totalorder %v270, %v297
    %v300 = vsel %vm298, %v265, 0.0
    %v301 = vsel %vm299, %v266, 0.0
    %v302 = vsel %vm298, %v267, 0.0
    %v303 = vsel %vm299, %v268, 0.0
    %v304 = vrot.slane %v300, 4
    %v305 = vmax.f32 %v300, %v304
    %v306 = vrot.slane %v305, 2
    %v307 = vmax.f32 %v305, %v306
    %v308 = vrot.slane %v307, 1
    %v309 = vmax.f32 %v307, %v308
    %v310 = vrot.slane %v301, 4
    %v311 = vmax.f32 %v301, %v310
    %v312 = vrot.slane %v311, 2
    %v313 = vmax.f32 %v311, %v312
    %v314 = vrot.slane %v313, 1
    %v315 = vmax.f32 %v313, %v314
    %v316 = vrot.slane %v302, 4
    %v317 = vmax.f32 %v302, %v316
    %v318 = vrot.slane %v317, 2
    %v319 = vmax.f32 %v317, %v318
    %v320 = vrot.slane %v319, 1
    %v321 = vmax.f32 %v319, %v320
    %v322 = vrot.slane %v303, 4
    %v323 = vmax.f32 %v303, %v322
    %v324 = vrot.slane %v323, 2
    %v325 = vmax.f32 %v323, %v324
    %v326 = vrot.slane %v325, 1
    %v327 = vmax.f32 %v325, %v326
    %v328 = vpack.c.bf16 %v309, %v309
    %v329 = vpack.c.bf16 %v315, %v315
    %v330 = vpack.c.bf16 %v321, %v321
    %v331 = vpack.c.bf16 %v327, %v327
    %v332 = vld [vmem:[#allocation7] sm:$0xf]
    %v333 = vld [vmem:[#allocation7 + $0x4] sm:$0xf]
    %v334 = vld [vmem:[#allocation7 + $0x8] sm:$0xf]
    %v335 = vld [vmem:[#allocation7 + $0xc] sm:$0xf]
    %v336 = vld [vmem:[#allocation7 + $0x10] sm:$0xf]
    %v337 = vld [vmem:[#allocation7 + $0x14] sm:$0xf]
    %v338 = vld [vmem:[#allocation7 + $0x18] sm:$0xf]
    %v339 = vld [vmem:[#allocation7 + $0x1c] sm:$0xf]
    %v340 = vld [vmem:[#allocation7 + $0x20] sm:$0xf]
    %v341 = vld [vmem:[#allocation7 + $0x24] sm:$0xf]
    %v342 = vld [vmem:[#allocation7 + $0x28] sm:$0xf]
    %v343 = vld [vmem:[#allocation7 + $0x2c] sm:$0xf]
    %v344 = vld [vmem:[#allocation7 + $0x30] sm:$0xf]
    %v345 = vld [vmem:[#allocation7 + $0x34] sm:$0xf]
    %v346 = vld [vmem:[#allocation7 + $0x38] sm:$0xf]
    %v347 = vld [vmem:[#allocation7 + $0x3c] sm:$0xf]
    %v348 = vld [vmem:[#allocation7 + $0x40] sm:$0xf]
    %v349 = vld [vmem:[#allocation7 + $0x44] sm:$0xf]
    %v350 = vld [vmem:[#allocation7 + $0x48] sm:$0xf]
    %v351 = vld [vmem:[#allocation7 + $0x4c] sm:$0xf]
    %v352 = vld [vmem:[#allocation7 + $0x50] sm:$0xf]
    %v353 = vld [vmem:[#allocation7 + $0x54] sm:$0xf]
    %v354 = vld [vmem:[#allocation7 + $0x58] sm:$0xf]
    %v355 = vld [vmem:[#allocation7 + $0x5c] sm:$0xf]
    %v356 = vld [vmem:[#allocation7 + $0x60] sm:$0xf]
    %v357 = vld [vmem:[#allocation7 + $0x64] sm:$0xf]
    %v358 = vld [vmem:[#allocation7 + $0x68] sm:$0xf]
    %v359 = vld [vmem:[#allocation7 + $0x6c] sm:$0xf]
    %v360 = vld [vmem:[#allocation7 + $0x70] sm:$0xf]
    %v361 = vld [vmem:[#allocation7 + $0x74] sm:$0xf]
    %v362 = vld [vmem:[#allocation7 + $0x78] sm:$0xf]
    %v363 = vld [vmem:[#allocation7 + $0x7c] sm:$0xf]
    %v364 = vld [vmem:[%s4] sm:$0x1]
    %v366 = vlaneseq
    %v367 = vshrl.u32 %v366, 7
    %v368 = vsub.s32 0, %v367
    %v369 = vrot.slane %v364, %v368
    %v375 = vunpack.c.l.b16 %v328
    %v376 = vunpack.c.l.b16 %v329
    %v377 = vunpack.c.l.b16 %v330
    %v378 = vunpack.c.l.b16 %v331
    %vm379 = vcmask 1041409
    %v380 = vsel %vm379, %v377, %v375
    %v381 = vsel %vm379, %v378, %v376
    %v382 = vpack.c.b16 %v380, %v380
    %v383 = vpack.c.b16 %v381, %v381
    %v418 = vunpack.c.l.b16 %v332
    %v419 = vunpack.c.l.b16 %v333
    %v420 = vunpack.c.l.b16 %v334
    %v421 = vunpack.c.l.b16 %v335
    %v422 = vunpack.c.l.b16 %v336
    %v423 = vunpack.c.l.b16 %v337
    %v424 = vunpack.c.l.b16 %v338
    %v425 = vunpack.c.l.b16 %v339
    %v426 = vunpack.c.l.b16 %v340
    %v427 = vunpack.c.l.b16 %v341
    %v428 = vunpack.c.l.b16 %v342
    %v429 = vunpack.c.l.b16 %v343
    %v430 = vunpack.c.l.b16 %v344
    %v431 = vunpack.c.l.b16 %v345
    %v432 = vunpack.c.l.b16 %v346
    %v433 = vunpack.c.l.b16 %v347
    %v434 = vunpack.c.l.b16 %v348
    %v435 = vunpack.c.l.b16 %v349
    %v436 = vunpack.c.l.b16 %v350
    %v437 = vunpack.c.l.b16 %v351
    %v438 = vunpack.c.l.b16 %v352
    %v439 = vunpack.c.l.b16 %v353
    %v440 = vunpack.c.l.b16 %v354
    %v441 = vunpack.c.l.b16 %v355
    %v442 = vunpack.c.l.b16 %v356
    %v443 = vunpack.c.l.b16 %v357
    %v444 = vunpack.c.l.b16 %v358
    %v445 = vunpack.c.l.b16 %v359
    %v446 = vunpack.c.l.b16 %v360
    %v447 = vunpack.c.l.b16 %v361
    %v448 = vunpack.c.l.b16 %v362
    %v449 = vunpack.c.l.b16 %v363
    %v450 = vpack.c.b16 %v419, %v418
    %v451 = vpack.c.b16 %v421, %v420
    %v452 = vpack.c.b16 %v423, %v422
    %v453 = vpack.c.b16 %v425, %v424
    %v454 = vpack.c.b16 %v427, %v426
    %v455 = vpack.c.b16 %v429, %v428
    %v456 = vpack.c.b16 %v431, %v430
    %v457 = vpack.c.b16 %v433, %v432
    %v458 = vpack.c.b16 %v435, %v434
    %v459 = vpack.c.b16 %v437, %v436
    %v460 = vpack.c.b16 %v439, %v438
    %v461 = vpack.c.b16 %v441, %v440
    %v462 = vpack.c.b16 %v443, %v442
    %v463 = vpack.c.b16 %v445, %v444
    %v464 = vpack.c.b16 %v447, %v446
    %v465 = vpack.c.b16 %v449, %v448
    %482 = vmatprep.subr.bf16.mxu0 0
    %483 = vmatpush1.bf16.msra.mxu0 %v457
    %484 = vmatprep.subr.bf16.mxu0 0
    %485 = vmatpush1.bf16.msra.mxu0 %v456
    %486 = vmatprep.subr.bf16.mxu0 0
    %487 = vmatpush1.bf16.msra.mxu0 %v455
    %488 = vmatprep.subr.bf16.mxu0 0
    %489 = vmatpush1.bf16.msra.mxu0 %v454
    %490 = vmatprep.subr.bf16.mxu0 0
    %491 = vmatpush1.bf16.msra.mxu0 %v453
    %492 = vmatprep.subr.bf16.mxu0 0
    %493 = vmatpush1.bf16.msra.mxu0 %v452
    %494 = vmatprep.subr.bf16.mxu0 0
    %495 = vmatpush1.bf16.msra.mxu0 %v451
    %496 = vmatprep.subr.bf16.mxu0 0
    %497 = vmatpush1.bf16.msra.mxu0 %v450
    %498 = vmatprep.subr.bf16.mxu0 0
    %499 = vmatpush2.bf16.msra.mxu0 %v465
    %500 = vmatprep.subr.bf16.mxu0 0
    %501 = vmatpush2.bf16.msra.mxu0 %v464
    %502 = vmatprep.subr.bf16.mxu0 0
    %503 = vmatpush2.bf16.msra.mxu0 %v463
    %504 = vmatprep.subr.bf16.mxu0 0
    %505 = vmatpush2.bf16.msra.mxu0 %v462
    %506 = vmatprep.subr.bf16.mxu0 0
    %507 = vmatpush2.bf16.msra.mxu0 %v461
    %508 = vmatprep.subr.bf16.mxu0 0
    %509 = vmatpush2.bf16.msra.mxu0 %v460
    %510 = vmatprep.subr.bf16.mxu0 0
    %511 = vmatpush2.bf16.msra.mxu0 %v459
    %512 = vmatprep.subr.bf16.mxu0 0
    %513 = vmatpush2.bf16.msra.mxu0 %v458
    %514 = vmatprep.mubr.bf16.mxu0 %v383
    %515 = vmatmul.mubr.bf16.gmra.mxu0 %v382
    %v516 = vpop.f32.mrf.mxu0
    %v517 = vadd.f32 %v369, %v516
    %v518 = vpop.f32.mrf.mxu0
    %v519 = vpop.f32.mrf.mxu0
    %v520 = vpop.f32.mrf.mxu0
    %521 = vdwg.mxu0
    %vm522 = vcmp.lt.s32.totalorder %v272, 3
    %v523 = vsel %vm522, %v517, -1e+30
    %vm524 = vcmask 1041408
    %v525 = vsel %vm524, %v523, -inf
    %526 = vmax.xlane.f32.xlu0 %v525
    %v527 = vpop.xlane.xlu0 %526
    %v528 = vsub.f32 %v523, %v527
    %v529 = vmul.f32 %v528, 1.442695
    %v530 = vpow.pop %v529
    %v531 = vsel %vm524, %v530, 0.0
    %532 = vadd.xlane.f32.xlu0 %v531
    %v533 = vpop.xlane.xlu0 %532
    %v534 = vrcp.pop %v533
    %v535 = vmul.f32 %v530, %v534
    %536 = vst [vmem:[#allocation8] sm:$0x3] %v535
    // Predicated region
    $region34: #{tpu_custom_call.1} parent=1 // pred_check
      _
    $region35: #{tpu_custom_call.1} parent=1 // pred_check_branch
      %538 = sbr.rel (0) target = $region37
    $region36: #{tpu_custom_call.1} parent=1 // pred_region
      %s540 = ssub.s32 32, 32
      %541 = vsyncadd [#allocation4], %s540
      %s543 = sshll.u32 [#allocation8], 4
      %s544 = int_to_ptr.vmem [resolvable:$true] %s543
      %546 = dma.vmem_to_hbm [thread:$0]  %s544, 32, %s5, [#allocation4]
    $region37: #{tpu_custom_call.1} parent=1 // pred_fallthru
      _
    // Predicated region
    $region38: #{tpu_custom_call.1} parent=1 // pred_check
      _
    $region39: #{tpu_custom_call.1} parent=1 // pred_check_branch
      %548 = sbr.rel (0) target = $region41
    $region40: #{tpu_custom_call.1} parent=1 // pred_region
      %549 = dma.done [#allocation4], 32
    $region41: #{tpu_custom_call.1} parent=1 // pred_fallthru
      _
    %550 = vsyncpa [#allocation3], 1
    %551 = vsyncpa [#allocation6], 1
    %552 = vsyncpa [#allocation4], 1

</llo_original>
